<compile_context>
chip_gen: v5e
topology: v5e:2x2
jax: 0.10.0
libtpu: 0.0.40
codegen_flags: <defaults>
</compile_context>

<pallas_src>
import jax
import jax.numpy as jnp
from jax.experimental import pallas as pl
from jax.experimental.pallas import tpu as pltpu


LANE = 128


def _round_up(x, m):
    return ((x + m - 1) // m) * m


def _pad2(a, rows, cols):
    return jnp.pad(a, ((0, rows - a.shape[0]), (0, cols - a.shape[1])))


def edgeconv_kernel(feat_ref, adj_ref, ti_ref,
                    w0a_ref, w0b_ref, b0_ref,
                    w1_ref, b1_ref,
                    wsc_ref, bsc_ref,
                    out_ref, acc_ref):
    e = pl.program_id(0)

    @pl.when(e == 0)
    def _init():
        acc_ref[...] = jnp.zeros_like(acc_ref)

    feat = feat_ref[...]                                    # (N, Fp)  f32
    ti = ti_ref[...].astype(jnp.float32)                    # (TE, N)  bf16 -> f32 (exact)
    adj = adj_ref[...].astype(jnp.float32)                  # (TE, N)

    # Gather endpoint features for this edge tile (dense one-hot matmuls).
    xi = jnp.dot(ti, feat, preferred_element_type=jnp.float32)        # (TE, Fp)
    xj = jnp.dot(adj, feat, preferred_element_type=jnp.float32) - xi  # x_j = (A-TI)@x

    # Linear(2F -> H0) in split-weight form + ReLU  (dropout: identity).
    h = (jnp.dot(xi, w0a_ref[...], preferred_element_type=jnp.float32)
         + jnp.dot(xj, w0b_ref[...], preferred_element_type=jnp.float32)
         + b0_ref[...])
    h = jnp.maximum(h, 0.0)                                            # (TE, H0p)

    # Linear(H0 -> H1) + ReLU.
    h = jnp.dot(h, w1_ref[...], preferred_element_type=jnp.float32) + b1_ref[...]
    h = jnp.maximum(h, 0.0)                                            # (TE, H1p)

    # Edge -> node aggregation: contract TI's edge axis directly (no .T / XLU).
    acc_ref[...] += jax.lax.dot_general(
        ti, h, dimension_numbers=(((0,), (0,)), ((), ())),
        preferred_element_type=jnp.float32)                            # (N, H1p)

    @pl.when(e == pl.num_programs(0) - 1)
    def _finalize():
        sc = (jnp.dot(feat, wsc_ref[...], preferred_element_type=jnp.float32)
              + bsc_ref[...])
        out_ref[...] = jnp.maximum(sc + acc_ref[...], 0.0)


def edge_conv_block(features, adj, ti, params, *, edge_tile=512):
    """features: (N, F) f32; adj, ti: (E, N); params: dict of pre-transposed weights."""
    N, F = features.shape
    E = adj.shape[0]
    H0 = params["w0a"].shape[1]
    H1 = params["w1"].shape[1]

    # Lane-dense padding of feature dims (exact: padded weight rows/cols are zero).
    Fp = _round_up(F, LANE)
    H0p = _round_up(H0, LANE)
    H1p = _round_up(H1, LANE)

    # Edge tile: multiple of 16 (bf16 sublane packing); zero-padded edges are inert
    # because their TI rows are zero, so they contribute nothing to the aggregation.
    TE = min(_round_up(edge_tile, 16), _round_up(E, 16))
    Ep = _round_up(E, TE)
    n_edge_tiles = Ep // TE

    feat_p = _pad2(features.astype(jnp.float32), N, Fp)
    adj_p = _pad2(adj, Ep, N).astype(jnp.bfloat16)
    ti_p = _pad2(ti, Ep, N).astype(jnp.bfloat16)
    w0a = _pad2(params["w0a"], Fp, H0p)
    w0b = _pad2(params["w0b"], Fp, H0p)
    b0 = _pad2(params["b0"], 1, H0p)
    w1 = _pad2(params["w1"], H0p, H1p)
    b1 = _pad2(params["b1"], 1, H1p)
    wsc = _pad2(params["wsc"], Fp, H1p)
    bsc = _pad2(params["bsc"], 1, H1p)

    const = lambda e: (0, 0)        # resident across the edge-reduction axis
    edge = lambda e: (e, 0)         # streamed (double-buffered) edge tiles

    flops = (2 * Ep * N * Fp * 2          # two (TE,N)x(N,Fp) gather matmuls
             + 2 * Ep * Fp * H0p * 2      # split first linear
             + 2 * Ep * H0p * H1p         # second linear
             + 2 * Ep * N * H1p           # edge->node aggregation
             + 2 * N * Fp * H1p)          # shortcut projection
    bytes_accessed = (N * Fp * 4 + 2 * Ep * N * 2 + N * H1p * 4
                      + 4 * (2 * Fp * H0p + H0p * H1p + Fp * H1p + H0p + 2 * H1p))

    out_p = pl.pallas_call(
        edgeconv_kernel,
        out_shape=jax.ShapeDtypeStruct((N, H1p), jnp.float32),
        grid_spec=pltpu.PrefetchScalarGridSpec(
            num_scalar_prefetch=0,
            grid=(n_edge_tiles,),
            in_specs=[
                pl.BlockSpec((N, Fp), const),       # features (fetched once)
                pl.BlockSpec((TE, N), edge),        # adjacency tile   (bf16)
                pl.BlockSpec((TE, N), edge),        # incidence tile   (bf16)
                pl.BlockSpec((Fp, H0p), const),     # W0[:F]
                pl.BlockSpec((Fp, H0p), const),     # W0[F:]
                pl.BlockSpec((1, H0p), const),      # b0
                pl.BlockSpec((H0p, H1p), const),    # W1
                pl.BlockSpec((1, H1p), const),      # b1
                pl.BlockSpec((Fp, H1p), const),     # Wsc
                pl.BlockSpec((1, H1p), const),      # bsc
            ],
            out_specs=pl.BlockSpec((N, H1p), const),
            scratch_shapes=[pltpu.VMEM((N, H1p), jnp.float32)],
        ),
        compiler_params=pltpu.CompilerParams(
            dimension_semantics=("arbitrary",),     # edge axis carries the accumulator
            vmem_limit_bytes=32 * 1024 * 1024,
        ),
        cost_estimate=pl.CostEstimate(
            flops=flops, transcendentals=0, bytes_accessed=bytes_accessed),
    )(feat_p, adj_p, ti_p, w0a, w0b, b0, w1, b1, wsc, bsc)

    return out_p[:, :H1]


def make_params(key, in_feat, out_feats):
    """Deterministic synthetic parameters (PyTorch Linear shapes, pre-transposed)."""
    h0, h1 = out_feats
    ks = jax.random.split(key, 6)
    scale = 0.1
    # Linear(2*in_feat -> h0), split into the two F-sized halves of the input.
    w0 = scale * jax.random.normal(ks[0], (2 * in_feat, h0), jnp.float32)
    return dict(
        w0a=w0[:in_feat],                     # (F, H0)
        w0b=w0[in_feat:],                     # (F, H0)
        b0=scale * jax.random.normal(ks[1], (1, h0), jnp.float32),
        w1=scale * jax.random.normal(ks[2], (h0, h1), jnp.float32),
        b1=scale * jax.random.normal(ks[3], (1, h1), jnp.float32),
        wsc=scale * jax.random.normal(ks[4], (in_feat, h1), jnp.float32),
        bsc=scale * jax.random.normal(ks[5], (1, h1), jnp.float32),
    )


def reference(features, adj, ti, params):
    """Pure-JAX f32 reference matching the PyTorch forward."""
    g = jnp.concatenate([ti @ features, (adj - ti) @ features], axis=1)
    w0 = jnp.concatenate([params["w0a"], params["w0b"]], axis=0)
    h = jnp.maximum(g @ w0 + params["b0"], 0.0)
    h = jnp.maximum(h @ params["w1"] + params["b1"], 0.0)
    agg = ti.T @ h
    sc = features @ params["wsc"] + params["bsc"]
    return jnp.maximum(sc + agg, 0.0)


if __name__ == "__main__":
    # Small shapes: N nodes, E edges, in_feat F, out_feats [H0, H1]
    N, E, F = 16, 48, 8
    out_feats = (32, 16)

    key = jax.random.PRNGKey(0)
    k_feat, k_edges, k_par = jax.random.split(key, 3)

    features = jax.random.normal(k_feat, (N, F), jnp.float32)

    # Edge list -> incidence matrices: TI (source one-hot) and Adj (source +
    # destination one-hots), so (Adj - TI) selects x_j.
    src = jax.random.randint(jax.random.fold_in(k_edges, 0), (E,), 0, N)
    dst = jax.random.randint(jax.random.fold_in(k_edges, 1), (E,), 0, N)
    ti = jax.nn.one_hot(src, N, dtype=jnp.float32)                 # (E, N)
    adj = ti + jax.nn.one_hot(dst, N, dtype=jnp.float32)           # (E, N)

    params = make_params(k_par, F, out_feats)

    # edge_tile=16 -> 3 edge tiles, exercising the accumulate/finalize path.
    out = edge_conv_block(features, adj, ti, params, edge_tile=16)
    out = jax.block_until_ready(out)

    ref = reference(features, adj, ti, params)
    assert out.shape == (N, out_feats[-1])
    assert jnp.allclose(out, ref, atol=1e-4, rtol=1e-4), "mismatch vs JAX reference"

    print("KERNEL_OK")
</pallas_src>

<mosaic_0001>
module attributes {stable_mosaic.version = 11 : i64} {
  func.func @edgeconv_kernel(%arg0: i32, %arg1: memref<16x128xf32, #tpu.memory_space<vmem>>, %arg2: memref<16x16xbf16, #tpu.memory_space<vmem>>, %arg3: memref<16x16xbf16, #tpu.memory_space<vmem>>, %arg4: memref<128x128xf32, #tpu.memory_space<vmem>>, %arg5: memref<128x128xf32, #tpu.memory_space<vmem>>, %arg6: memref<1x128xf32, #tpu.memory_space<vmem>>, %arg7: memref<128x128xf32, #tpu.memory_space<vmem>>, %arg8: memref<1x128xf32, #tpu.memory_space<vmem>>, %arg9: memref<128x128xf32, #tpu.memory_space<vmem>>, %arg10: memref<1x128xf32, #tpu.memory_space<vmem>>, %arg11: memref<16x128xf32, #tpu.memory_space<vmem>>, %arg12: memref<16x128xf32, #tpu.memory_space<vmem>>) attributes {dimension_semantics = [#tpu.dimension_semantics<arbitrary>], iteration_bounds = array<i64: 3>, scalar_prefetch = 0 : i64, scratch_operands = 1 : i64, tpu.core_type = #tpu.core_type<tc>, window_params = [{pipeline_mode = #tpu.pipeline_mode<synchronous>, transform_indices = @transform_0, window_bounds = array<i64: 16, 128>}, {transform_indices = @transform_1, window_bounds = array<i64: 16, 16>}, {transform_indices = @transform_2, window_bounds = array<i64: 16, 16>}, {pipeline_mode = #tpu.pipeline_mode<synchronous>, transform_indices = @transform_3, window_bounds = array<i64: 128, 128>}, {pipeline_mode = #tpu.pipeline_mode<synchronous>, transform_indices = @transform_4, window_bounds = array<i64: 128, 128>}, {pipeline_mode = #tpu.pipeline_mode<synchronous>, transform_indices = @transform_5, window_bounds = array<i64: 1, 128>}, {pipeline_mode = #tpu.pipeline_mode<synchronous>, transform_indices = @transform_6, window_bounds = array<i64: 128, 128>}, {pipeline_mode = #tpu.pipeline_mode<synchronous>, transform_indices = @transform_7, window_bounds = array<i64: 1, 128>}, {pipeline_mode = #tpu.pipeline_mode<synchronous>, transform_indices = @transform_8, window_bounds = array<i64: 128, 128>}, {pipeline_mode = #tpu.pipeline_mode<synchronous>, transform_indices = @transform_9, window_bounds = array<i64: 1, 128>}, {pipeline_mode = #tpu.pipeline_mode<synchronous>, transform_indices = @transform_10, window_bounds = array<i64: 16, 128>}]} {
    %c0_i32 = arith.constant 0 : i32
    %0 = arith.cmpi eq, %arg0, %c0_i32 : i32
    %1 = arith.extui %0 : i1 to i32
    %c0_i32_0 = arith.constant 0 : i32
    %2 = arith.cmpi ne, %1, %c0_i32_0 : i32
    scf.if %2 {
      %cst_28 = arith.constant 0.000000e+00 : f32
      %35 = vector.broadcast %cst_28 : f32 to vector<16x128xf32>
      %c0_29 = arith.constant 0 : index
      %c0_30 = arith.constant 0 : index
      %36 = vector.load %arg12[%c0_29, %c0_30] : memref<16x128xf32, #tpu.memory_space<vmem>>, vector<16x128xf32>
      tpu.vector_store %arg12[%c0_29, %c0_30], %35 {strides = array<i32>} : memref<16x128xf32, #tpu.memory_space<vmem>>, vector<16x128xf32>,
    } else {
    }
    %c0 = arith.constant 0 : index
    %c0_1 = arith.constant 0 : index
    %3 = vector.load %arg1[%c0, %c0_1] : memref<16x128xf32, #tpu.memory_space<vmem>>, vector<16x128xf32>
    %c0_2 = arith.constant 0 : index
    %c0_3 = arith.constant 0 : index
    %4 = vector.load %arg3[%c0_2, %c0_3] : memref<16x16xbf16, #tpu.memory_space<vmem>>, vector<16x16xbf16>
    %5 = arith.extf %4 : vector<16x16xbf16> to vector<16x16xf32>
    %c0_4 = arith.constant 0 : index
    %c0_5 = arith.constant 0 : index
    %6 = vector.load %arg2[%c0_4, %c0_5] : memref<16x16xbf16, #tpu.memory_space<vmem>>, vector<16x16xbf16>
    %7 = arith.extf %6 : vector<16x16xbf16> to vector<16x16xf32>
    %cst = arith.constant dense<0.000000e+00> : vector<16x128xf32>
    %8 = tpu.matmul %5, %3, %cst {dimension_numbers = #tpu.dot_dimension_numbers<[1], [0], [0], [1], [0, 0, 1, 1], [], []>} : vector<16x16xf32>, vector<16x128xf32>, vector<16x128xf32> -> vector<16x128xf32>
    %cst_6 = arith.constant dense<0.000000e+00> : vector<16x128xf32>
    %9 = tpu.matmul %7, %3, %cst_6 {dimension_numbers = #tpu.dot_dimension_numbers<[1], [0], [0], [1], [0, 0, 1, 1], [], []>} : vector<16x16xf32>, vector<16x128xf32>, vector<16x128xf32> -> vector<16x128xf32>
    %10 = arith.subf %9, %8 : vector<16x128xf32>
    %c0_7 = arith.constant 0 : index
    %c0_8 = arith.constant 0 : index
    %11 = vector.load %arg4[%c0_7, %c0_8] : memref<128x128xf32, #tpu.memory_space<vmem>>, vector<128x128xf32>
    %cst_9 = arith.constant dense<0.000000e+00> : vector<16x128xf32>
    %12 = tpu.matmul %8, %11, %cst_9 {dimension_numbers = #tpu.dot_dimension_numbers<[1], [0], [0], [1], [0, 0, 1, 1], [], []>} : vector<16x128xf32>, vector<128x128xf32>, vector<16x128xf32> -> vector<16x128xf32>
    %c0_10 = arith.constant 0 : index
    %c0_11 = arith.constant 0 : index
    %13 = vector.load %arg5[%c0_10, %c0_11] : memref<128x128xf32, #tpu.memory_space<vmem>>, vector<128x128xf32>
    %cst_12 = arith.constant dense<0.000000e+00> : vector<16x128xf32>
    %14 = tpu.matmul %10, %13, %cst_12 {dimension_numbers = #tpu.dot_dimension_numbers<[1], [0], [0], [1], [0, 0, 1, 1], [], []>} : vector<16x128xf32>, vector<128x128xf32>, vector<16x128xf32> -> vector<16x128xf32>
    %15 = arith.addf %12, %14 : vector<16x128xf32>
    %c0_13 = arith.constant 0 : index
    %c0_14 = arith.constant 0 : index
    %16 = vector.load %arg6[%c0_13, %c0_14] : memref<1x128xf32, #tpu.memory_space<vmem>>, vector<1x128xf32>
    %17 = vector.broadcast %16 : vector<1x128xf32> to vector<16x128xf32>
    %18 = arith.addf %15, %17 : vector<16x128xf32>
    %cst_15 = arith.constant 0.000000e+00 : f32
    %19 = vector.broadcast %cst_15 : f32 to vector<16x128xf32>
    %20 = arith.maximumf %18, %19 : vector<16x128xf32>
    %c0_16 = arith.constant 0 : index
    %c0_17 = arith.constant 0 : index
    %21 = vector.load %arg7[%c0_16, %c0_17] : memref<128x128xf32, #tpu.memory_space<vmem>>, vector<128x128xf32>
    %cst_18 = arith.constant dense<0.000000e+00> : vector<16x128xf32>
    %22 = tpu.matmul %20, %21, %cst_18 {dimension_numbers = #tpu.dot_dimension_numbers<[1], [0], [0], [1], [0, 0, 1, 1], [], []>} : vector<16x128xf32>, vector<128x128xf32>, vector<16x128xf32> -> vector<16x128xf32>
    %c0_19 = arith.constant 0 : index
    %c0_20 = arith.constant 0 : index
    %23 = vector.load %arg8[%c0_19, %c0_20] : memref<1x128xf32, #tpu.memory_space<vmem>>, vector<1x128xf32>
    %24 = vector.broadcast %23 : vector<1x128xf32> to vector<16x128xf32>
    %25 = arith.addf %22, %24 : vector<16x128xf32>
    %cst_21 = arith.constant 0.000000e+00 : f32
    %26 = vector.broadcast %cst_21 : f32 to vector<16x128xf32>
    %27 = arith.maximumf %25, %26 : vector<16x128xf32>
    %c0_22 = arith.constant 0 : index
    %c0_23 = arith.constant 0 : index
    %28 = vector.load %arg12[%c0_22, %c0_23] : memref<16x128xf32, #tpu.memory_space<vmem>>, vector<16x128xf32>
    %cst_24 = arith.constant dense<0.000000e+00> : vector<16x128xf32>
    %29 = tpu.matmul %5, %27, %cst_24 {dimension_numbers = #tpu.dot_dimension_numbers<[0], [0], [1], [1], [0, 1, 1, 1], [], []>} : vector<16x16xf32>, vector<16x128xf32>, vector<16x128xf32> -> vector<16x128xf32>
    %30 = arith.addf %28, %29 : vector<16x128xf32>
    %c0_25 = arith.constant 0 : index
    %c0_26 = arith.constant 0 : index
    %31 = vector.load %arg12[%c0_25, %c0_26] : memref<16x128xf32, #tpu.memory_space<vmem>>, vector<16x128xf32>
    tpu.vector_store %arg12[%c0_25, %c0_26], %30 {strides = array<i32>} : memref<16x128xf32, #tpu.memory_space<vmem>>, vector<16x128xf32>,
    %c2_i32 = arith.constant 2 : i32
    %32 = arith.cmpi eq, %arg0, %c2_i32 : i32
    %33 = arith.extui %32 : i1 to i32
    %c0_i32_27 = arith.constant 0 : i32
    %34 = arith.cmpi ne, %33, %c0_i32_27 : i32
    scf.if %34 {
      %c0_28 = arith.constant 0 : index
      %c0_29 = arith.constant 0 : index
      %35 = vector.load %arg9[%c0_28, %c0_29] : memref<128x128xf32, #tpu.memory_space<vmem>>, vector<128x128xf32>
      %cst_30 = arith.constant dense<0.000000e+00> : vector<16x128xf32>
      %36 = tpu.matmul %3, %35, %cst_30 {dimension_numbers = #tpu.dot_dimension_numbers<[1], [0], [0], [1], [0, 0, 1, 1], [], []>} : vector<16x128xf32>, vector<128x128xf32>, vector<16x128xf32> -> vector<16x128xf32>
      %c0_31 = arith.constant 0 : index
      %c0_32 = arith.constant 0 : index
      %37 = vector.load %arg10[%c0_31, %c0_32] : memref<1x128xf32, #tpu.memory_space<vmem>>, vector<1x128xf32>
      %38 = vector.broadcast %37 : vector<1x128xf32> to vector<16x128xf32>
      %39 = arith.addf %36, %38 : vector<16x128xf32>
      %c0_33 = arith.constant 0 : index
      %c0_34 = arith.constant 0 : index
      %40 = vector.load %arg12[%c0_33, %c0_34] : memref<16x128xf32, #tpu.memory_space<vmem>>, vector<16x128xf32>
      %41 = arith.addf %39, %40 : vector<16x128xf32>
      %cst_35 = arith.constant 0.000000e+00 : f32
      %42 = vector.broadcast %cst_35 : f32 to vector<16x128xf32>
      %43 = arith.maximumf %41, %42 : vector<16x128xf32>
      %c0_36 = arith.constant 0 : index
      %c0_37 = arith.constant 0 : index
      %44 = vector.load %arg11[%c0_36, %c0_37] : memref<16x128xf32, #tpu.memory_space<vmem>>, vector<16x128xf32>
      tpu.vector_store %arg11[%c0_36, %c0_37], %43 {strides = array<i32>} : memref<16x128xf32, #tpu.memory_space<vmem>>, vector<16x128xf32>,
    } else {
    }
    return
  }
  func.func @transform_0(%arg0: i32) -> (i32, i32) {
    %c0_i32 = arith.constant 0 : i32
    %c0_i32_0 = arith.constant 0 : i32
    %c0_i32_1 = arith.constant 0 : i32
    return %c0_i32, %c0_i32_0 : i32, i32
  }
  func.func @transform_1(%arg0: i32) -> (i32, i32) {
    %c0_i32 = arith.constant 0 : i32
    %c0_i32_0 = arith.constant 0 : i32
    return %arg0, %c0_i32 : i32, i32
  }
  func.func @transform_2(%arg0: i32) -> (i32, i32) {
    %c0_i32 = arith.constant 0 : i32
    %c0_i32_0 = arith.constant 0 : i32
    return %arg0, %c0_i32 : i32, i32
  }
  func.func @transform_3(%arg0: i32) -> (i32, i32) {
    %c0_i32 = arith.constant 0 : i32
    %c0_i32_0 = arith.constant 0 : i32
    %c0_i32_1 = arith.constant 0 : i32
    return %c0_i32, %c0_i32_0 : i32, i32
  }
  func.func @transform_4(%arg0: i32) -> (i32, i32) {
    %c0_i32 = arith.constant 0 : i32
    %c0_i32_0 = arith.constant 0 : i32
    %c0_i32_1 = arith.constant 0 : i32
    return %c0_i32, %c0_i32_0 : i32, i32
  }
  func.func @transform_5(%arg0: i32) -> (i32, i32) {
    %c0_i32 = arith.constant 0 : i32
    %c0_i32_0 = arith.constant 0 : i32
    %c0_i32_1 = arith.constant 0 : i32
    return %c0_i32, %c0_i32_0 : i32, i32
  }
  func.func @transform_6(%arg0: i32) -> (i32, i32) {
    %c0_i32 = arith.constant 0 : i32
    %c0_i32_0 = arith.constant 0 : i32
    %c0_i32_1 = arith.constant 0 : i32
    return %c0_i32, %c0_i32_0 : i32, i32
  }
  func.func @transform_7(%arg0: i32) -> (i32, i32) {
    %c0_i32 = arith.constant 0 : i32
    %c0_i32_0 = arith.constant 0 : i32
    %c0_i32_1 = arith.constant 0 : i32
    return %c0_i32, %c0_i32_0 : i32, i32
  }
  func.func @transform_8(%arg0: i32) -> (i32, i32) {
    %c0_i32 = arith.constant 0 : i32
    %c0_i32_0 = arith.constant 0 : i32
    %c0_i32_1 = arith.constant 0 : i32
    return %c0_i32, %c0_i32_0 : i32, i32
  }
  func.func @transform_9(%arg0: i32) -> (i32, i32) {
    %c0_i32 = arith.constant 0 : i32
    %c0_i32_0 = arith.constant 0 : i32
    %c0_i32_1 = arith.constant 0 : i32
    return %c0_i32, %c0_i32_0 : i32, i32
  }
  func.func @transform_10(%arg0: i32) -> (i32, i32) {
    %c0_i32 = arith.constant 0 : i32
    %c0_i32_0 = arith.constant 0 : i32
    %c0_i32_1 = arith.constant 0 : i32
    return %c0_i32, %c0_i32_0 : i32, i32
  }
}

</mosaic_0001>

<llo_original>
// kernel: tpu_custom_call.1
$region0: #{tpu_custom_call.1}
  #allocation0 [shape = 'u32[]', space=smem, size = 0x4, offset = 0x4, fixed_abs, tag = 'smem constant byte address 0x4 - core index']
  #allocation1 [shape = 'u32[72,128]{1,0:T(1,128)}', space=vmem, size = 0x9000, scoped, tag = 'internal scratch']
  #allocation2 [shape = 'f32[16,128]{1,0:T(8,128)}', space=vmem, size = 0x2000, scoped, tag = 'scratch operand']
  %s0 = inlined_call_operand.vmem [shape: f32[16,128], index: 0, kind: input, shape index: {}]
  %s1 = inlined_call_operand.vmem [shape: bf16[48,16], index: 1, kind: input, shape index: {}]
  %s2 = inlined_call_operand.vmem [shape: bf16[48,16], index: 2, kind: input, shape index: {}]
  %s3 = inlined_call_operand.hbm [shape: f32[128,128], index: 3, kind: input, shape index: {}]
  %s4 = inlined_call_operand.hbm [shape: f32[128,128], index: 4, kind: input, shape index: {}]
  %s5 = inlined_call_operand.vmem [shape: f32[1,128], index: 5, kind: input, shape index: {}]
  %s6 = inlined_call_operand.hbm [shape: f32[128,128], index: 6, kind: input, shape index: {}]
  %s7 = inlined_call_operand.vmem [shape: f32[1,128], index: 7, kind: input, shape index: {}]
  %s8 = inlined_call_operand.hbm [shape: f32[128,128], index: 8, kind: input, shape index: {}]
  %s9 = inlined_call_operand.vmem [shape: f32[1,128], index: 9, kind: input, shape index: {}]
  %s10 = inlined_call_operand.hbm [shape: f32[16,128], index: 10, kind: output, shape index: {}]
  %s11 = sld [smem:[#allocation0]]
  $region97: #{tpu_custom_call.1} parent=0
    _
  %s13 = ssub.s32 1, %s11
  %s14 = scalar_select 0, %s13, %s11
  $region1: #{tpu_custom_call.1} parent=0
    #allocation3 [shape = 'u8[65536]{0}', space=vmem, size = 0x10000, scoped, tag = 'input window, operand 3, single buffered']
    #allocation4 [shape = 's32[2]{0}', space=sflag, size = 0x8, scoped, tag = 'scoped memory for tpu_custom_call.1']
    #allocation5 [shape = 's32[2]{0}', space=sflag, size = 0x8, scoped, tag = 'scoped memory for tpu_custom_call.1']
    #allocation6 [shape = 'u8[65536]{0}', space=vmem, size = 0x10000, scoped, tag = 'input window, operand 4, single buffered']
    #allocation7 [shape = 's32[1]{0}', space=sflag, size = 0x4, scoped, tag = 'scoped memory for tpu_custom_call.1']
    #allocation8 [shape = 'u8[65536]{0}', space=vmem, size = 0x10000, scoped, tag = 'input window, operand 6, single buffered']
    #allocation9 [shape = 'u8[65536]{0}', space=vmem, size = 0x10000, scoped, tag = 'input window, operand 8, single buffered']
    #allocation10 [shape = 's32[1]{0}', space=sflag, size = 0x4, scoped, tag = 'scoped memory for tpu_custom_call.1']
    #allocation11 [shape = 'u8[8192]{0}', space=vmem, size = 0x2000, scoped, tag = 'output window, operand 0, single buffered']
    %15 = vsyncpa [#allocation4], 0
    %16 = vsyncpa [#allocation7], 0
    %17 = vsyncpa [#allocation10], 0
    %18 = vsyncpa [#allocation5], 0
    loop: start=0, step=1, limit=5
    $region2: #{tpu_custom_call.1} parent=1 // loop_pre_header
      _
    $region3: #{tpu_custom_call.1} parent=1 // loop_header
      %s20 = sphi 0, %s24
      %p21 = scmp.ge.s32.totalorder %s20, 5
      %s28 = sphi 0, %s28
      %s30 = sphi 0, %s28
      %s31 = sphi 0, %s30
      %s45 = sphi 0, %s31
      %s51 = sphi 0, %s53
      %s54 = sphi 0, %s51
      %s55 = sphi 0, %s54
      %s71 = sphi 0, %s55
      %s77 = sphi 0, %s79
      %s80 = sphi 0, %s77
      %s81 = sphi 0, %s80
      %s97 = sphi 0, %s81
      %s101 = sphi 0, %s101
      %s103 = sphi 0, %s101
      %s104 = sphi 0, %s103
      %s118 = sphi 0, %s104
      %s122 = sphi 0, %s122
      %s124 = sphi 0, %s122
      %s125 = sphi 0, %s124
      %s139 = sphi 0, %s125
      %s143 = sphi 0, %s143
      %s145 = sphi 0, %s143
      %s146 = sphi 0, %s145
      %s160 = sphi 0, %s146
      %s164 = sphi 0, %s164
      %s166 = sphi 0, %s164
      %s167 = sphi 0, %s166
      %s181 = sphi 0, %s167
      %s185 = sphi 0, %s185
      %s187 = sphi 0, %s185
      %s188 = sphi 0, %s187
      %s202 = sphi 0, %s188
      %s206 = sphi 0, %s206
      %s208 = sphi 0, %s206
      %s209 = sphi 0, %s208
      %s223 = sphi 0, %s209
      %s227 = sphi 0, %s227
      %s229 = sphi 0, %s227
      %s230 = sphi 0, %s229
      %s244 = sphi 0, %s230
      %s248 = sphi 0, %s248
      %s250 = sphi 0, %s248
      %s251 = sphi 0, %s250
      %s265 = sphi 0, %s251
    $region4: #{tpu_custom_call.1} parent=1 // loop_header_branch
      %23 = sbr.rel (%p21) target = $region8
    $region5: #{tpu_custom_call.1} parent=1 // loop_body
      %s25 = ssub.s32 %s20, 1
      %s26 = ssub.s32 %s20, 2
      %s27 = sadd.s32 %s20, 1
      %s29 = sadd.s32 %s28, 1
      %p32 = scmp.eq.s32.totalorder %s20, 2
      %p33 = scmp.ne.s32.totalorder %s28, %s30
      %p34 = scmp.eq.s32.totalorder %s20, 0
      %p35 = por %p33, %p34
      %p36 = scmp.ne.s32.totalorder %s28, %s30
      %p37 = scmp.eq.s32.totalorder %s25, 2
      %p38 = por %p36, %p37
      %p39 = scmp.ne.s32.totalorder %s30, %s31
      %p40 = scmp.eq.s32.totalorder %s25, 0
      %p41 = por %p39, %p40
      %p42 = scmp.ne.s32.totalorder %s30, %s31
      %p43 = scmp.eq.s32.totalorder %s26, 2
      %p44 = por %p42, %p43
      %p46 = scmp.ne.s32.totalorder %s31, %s45
      %p47 = scmp.eq.s32.totalorder %s26, 0
      %p48 = por %p46, %p47
      %s49 = ssub.s32 %s20, %s27
      %p50 = scmp.eq.s32.totalorder %s49, 0
      %s52 = sadd.s32 %s51, 1
      %s53 = scalar_select %p50, %s51, %s52
      %p56 = pneg %p50
      %p57 = scmp.eq.s32.totalorder %s20, 2
      %p58 = por %p56, %p57
      %p59 = scmp.ne.s32.totalorder %s51, %s54
      %p60 = scmp.eq.s32.totalorder %s20, 0
      %p61 = por %p59, %p60
      %p62 = scmp.ne.s32.totalorder %s51, %s54
      %p63 = scmp.eq.s32.totalorder %s25, 2
      %p64 = por %p62, %p63
      %p65 = scmp.ne.s32.totalorder %s54, %s55
      %p66 = scmp.eq.s32.totalorder %s25, 0
      %p67 = por %p65, %p66
      %p68 = scmp.ne.s32.totalorder %s54, %s55
      %p69 = scmp.eq.s32.totalorder %s26, 2
      %p70 = por %p68, %p69
      %p72 = scmp.ne.s32.totalorder %s55, %s71
      %p73 = scmp.eq.s32.totalorder %s26, 0
      %p74 = por %p72, %p73
      %s75 = ssub.s32 %s20, %s27
      %p76 = scmp.eq.s32.totalorder %s75, 0
      %s78 = sadd.s32 %s77, 1
      %s79 = scalar_select %p76, %s77, %s78
      %p82 = pneg %p76
      %p83 = scmp.eq.s32.totalorder %s20, 2
      %p84 = por %p82, %p83
      %p85 = scmp.ne.s32.totalorder %s77, %s80
      %p86 = scmp.eq.s32.totalorder %s20, 0
      %p87 = por %p85, %p86
      %p88 = scmp.ne.s32.totalorder %s77, %s80
      %p89 = scmp.eq.s32.totalorder %s25, 2
      %p90 = por %p88, %p89
      %p91 = scmp.ne.s32.totalorder %s80, %s81
      %p92 = scmp.eq.s32.totalorder %s25, 0
      %p93 = por %p91, %p92
      %p94 = scmp.ne.s32.totalorder %s80, %s81
      %p95 = scmp.eq.s32.totalorder %s26, 2
      %p96 = por %p94, %p95
      %p98 = scmp.ne.s32.totalorder %s81, %s97
      %p99 = scmp.eq.s32.totalorder %s26, 0
      %p100 = por %p98, %p99
      %s102 = sadd.s32 %s101, 1
      %p105 = scmp.eq.s32.totalorder %s20, 2
      %p106 = scmp.ne.s32.totalorder %s101, %s103
      %p107 = scmp.eq.s32.totalorder %s20, 0
      %p108 = por %p106, %p107
      %p109 = scmp.ne.s32.totalorder %s101, %s103
      %p110 = scmp.eq.s32.totalorder %s25, 2
      %p111 = por %p109, %p110
      %p112 = scmp.ne.s32.totalorder %s103, %s104
      %p113 = scmp.eq.s32.totalorder %s25, 0
      %p114 = por %p112, %p113
      %p115 = scmp.ne.s32.totalorder %s103, %s104
      %p116 = scmp.eq.s32.totalorder %s26, 2
      %p117 = por %p115, %p116
      %p119 = scmp.ne.s32.totalorder %s104, %s118
      %p120 = scmp.eq.s32.totalorder %s26, 0
      %p121 = por %p119, %p120
      %s123 = sadd.s32 %s122, 1
      %p126 = scmp.eq.s32.totalorder %s20, 2
      %p127 = scmp.ne.s32.totalorder %s122, %s124
      %p128 = scmp.eq.s32.totalorder %s20, 0
      %p129 = por %p127, %p128
      %p130 = scmp.ne.s32.totalorder %s122, %s124
      %p131 = scmp.eq.s32.totalorder %s25, 2
      %p132 = por %p130, %p131
      %p133 = scmp.ne.s32.totalorder %s124, %s125
      %p134 = scmp.eq.s32.totalorder %s25, 0
      %p135 = por %p133, %p134
      %p136 = scmp.ne.s32.totalorder %s124, %s125
      %p137 = scmp.eq.s32.totalorder %s26, 2
      %p138 = por %p136, %p137
      %p140 = scmp.ne.s32.totalorder %s125, %s139
      %p141 = scmp.eq.s32.totalorder %s26, 0
      %p142 = por %p140, %p141
      %s144 = sadd.s32 %s143, 1
      %p147 = scmp.eq.s32.totalorder %s20, 2
      %p148 = scmp.ne.s32.totalorder %s143, %s145
      %p149 = scmp.eq.s32.totalorder %s20, 0
      %p150 = por %p148, %p149
      %p151 = scmp.ne.s32.totalorder %s143, %s145
      %p152 = scmp.eq.s32.totalorder %s25, 2
      %p153 = por %p151, %p152
      %p154 = scmp.ne.s32.totalorder %s145, %s146
      %p155 = scmp.eq.s32.totalorder %s25, 0
      %p156 = por %p154, %p155
      %p157 = scmp.ne.s32.totalorder %s145, %s146
      %p158 = scmp.eq.s32.totalorder %s26, 2
      %p159 = por %p157, %p158
      %p161 = scmp.ne.s32.totalorder %s146, %s160
      %p162 = scmp.eq.s32.totalorder %s26, 0
      %p163 = por %p161, %p162
      %s165 = sadd.s32 %s164, 1
      %p168 = scmp.eq.s32.totalorder %s20, 2
      %p169 = scmp.ne.s32.totalorder %s164, %s166
      %p170 = scmp.eq.s32.totalorder %s20, 0
      %p171 = por %p169, %p170
      %p172 = scmp.ne.s32.totalorder %s164, %s166
      %p173 = scmp.eq.s32.totalorder %s25, 2
      %p174 = por %p172, %p173
      %p175 = scmp.ne.s32.totalorder %s166, %s167
      %p176 = scmp.eq.s32.totalorder %s25, 0
      %p177 = por %p175, %p176
      %p178 = scmp.ne.s32.totalorder %s166, %s167
      %p179 = scmp.eq.s32.totalorder %s26, 2
      %p180 = por %p178, %p179
      %p182 = scmp.ne.s32.totalorder %s167, %s181
      %p183 = scmp.eq.s32.totalorder %s26, 0
      %p184 = por %p182, %p183
      %s186 = sadd.s32 %s185, 1
      %p189 = scmp.eq.s32.totalorder %s20, 2
      %p190 = scmp.ne.s32.totalorder %s185, %s187
      %p191 = scmp.eq.s32.totalorder %s20, 0
      %p192 = por %p190, %p191
      %p193 = scmp.ne.s32.totalorder %s185, %s187
      %p194 = scmp.eq.s32.totalorder %s25, 2
      %p195 = por %p193, %p194
      %p196 = scmp.ne.s32.totalorder %s187, %s188
      %p197 = scmp.eq.s32.totalorder %s25, 0
      %p198 = por %p196, %p197
      %p199 = scmp.ne.s32.totalorder %s187, %s188
      %p200 = scmp.eq.s32.totalorder %s26, 2
      %p201 = por %p199, %p200
      %p203 = scmp.ne.s32.totalorder %s188, %s202
      %p204 = scmp.eq.s32.totalorder %s26, 0
      %p205 = por %p203, %p204
      %s207 = sadd.s32 %s206, 1
      %p210 = scmp.eq.s32.totalorder %s20, 2
      %p211 = scmp.ne.s32.totalorder %s206, %s208
      %p212 = scmp.eq.s32.totalorder %s20, 0
      %p213 = por %p211, %p212
      %p214 = scmp.ne.s32.totalorder %s206, %s208
      %p215 = scmp.eq.s32.totalorder %s25, 2
      %p216 = por %p214, %p215
      %p217 = scmp.ne.s32.totalorder %s208, %s209
      %p218 = scmp.eq.s32.totalorder %s25, 0
      %p219 = por %p217, %p218
      %p220 = scmp.ne.s32.totalorder %s208, %s209
      %p221 = scmp.eq.s32.totalorder %s26, 2
      %p222 = por %p220, %p221
      %p224 = scmp.ne.s32.totalorder %s209, %s223
      %p225 = scmp.eq.s32.totalorder %s26, 0
      %p226 = por %p224, %p225
      %s228 = sadd.s32 %s227, 1
      %p231 = scmp.eq.s32.totalorder %s20, 2
      %p232 = scmp.ne.s32.totalorder %s227, %s229
      %p233 = scmp.eq.s32.totalorder %s20, 0
      %p234 = por %p232, %p233
      %p235 = scmp.ne.s32.totalorder %s227, %s229
      %p236 = scmp.eq.s32.totalorder %s25, 2
      %p237 = por %p235, %p236
      %p238 = scmp.ne.s32.totalorder %s229, %s230
      %p239 = scmp.eq.s32.totalorder %s25, 0
      %p240 = por %p238, %p239
      %p241 = scmp.ne.s32.totalorder %s229, %s230
      %p242 = scmp.eq.s32.totalorder %s26, 2
      %p243 = por %p241, %p242
      %p245 = scmp.ne.s32.totalorder %s230, %s244
      %p246 = scmp.eq.s32.totalorder %s26, 0
      %p247 = por %p245, %p246
      %s249 = sadd.s32 %s248, 1
      %p252 = scmp.eq.s32.totalorder %s20, 2
      %p253 = scmp.ne.s32.totalorder %s248, %s250
      %p254 = scmp.eq.s32.totalorder %s20, 0
      %p255 = por %p253, %p254
      %p256 = scmp.ne.s32.totalorder %s248, %s250
      %p257 = scmp.eq.s32.totalorder %s25, 2
      %p258 = por %p256, %p257
      %p259 = scmp.ne.s32.totalorder %s250, %s251
      %p260 = scmp.eq.s32.totalorder %s25, 0
      %p261 = por %p259, %p260
      %p262 = scmp.ne.s32.totalorder %s250, %s251
      %p263 = scmp.eq.s32.totalorder %s26, 2
      %p264 = por %p262, %p263
      %p266 = scmp.ne.s32.totalorder %s251, %s265
      %p267 = scmp.eq.s32.totalorder %s26, 0
      %p268 = por %p266, %p267
      %p269 = scmp.le.s32.totalorder 1, %s20
      %p270 = scmp.lt.s32.totalorder %s20, 4
      %p271 = pnand %p269, %p270
      %p272 = pneg %p271
      // Predicated region
      $region9: #{tpu_custom_call.1} parent=5 // pred_check
        _
      $region10: #{tpu_custom_call.1} parent=5 // pred_check_branch
        %274 = sbr.rel (%p271) target = $region12
      $region11: #{tpu_custom_call.1} parent=5 // pred_region
        %s275 = ssub.s32 %s20, 1
        // Predicated region
        $region13: #{tpu_custom_call.1} parent=11 // pred_check
          %p276 = pneg %p41
        $region14: #{tpu_custom_call.1} parent=11 // pred_check_branch
          %278 = sbr.rel (%p276) target = $region16
        $region15: #{tpu_custom_call.1} parent=11 // pred_region
          _
        $region16: #{tpu_custom_call.1} parent=11 // pred_fallthru
          _
        // Predicated region
        $region17: #{tpu_custom_call.1} parent=11 // pred_check
          %p279 = pneg %p114
        $region18: #{tpu_custom_call.1} parent=11 // pred_check_branch
          %281 = sbr.rel (%p279) target = $region20
        $region19: #{tpu_custom_call.1} parent=11 // pred_region
          %283 = vsyncadd [#allocation4], 0
          %s284 = sshll.u32 %s3, 4
          %s285 = int_to_ptr.hbm [resolvable:$true] %s284
          %s286 = sshll.u32 [#allocation3], 4
          %s287 = int_to_ptr.vmem [resolvable:$true] %s286
          %292 = dma.hbm_to_vmem [thread:$0]  %s285, 2048, %s287, [#allocation4], 128, 128, 8
        $region20: #{tpu_custom_call.1} parent=11 // pred_fallthru
          _
        // Predicated region
        $region21: #{tpu_custom_call.1} parent=11 // pred_check
          %p293 = pneg %p135
        $region22: #{tpu_custom_call.1} parent=11 // pred_check_branch
          %295 = sbr.rel (%p293) target = $region24
        $region23: #{tpu_custom_call.1} parent=11 // pred_region
          %297 = vsyncadd [#allocation7], 0
          %s298 = sshll.u32 %s4, 4
          %s299 = int_to_ptr.hbm [resolvable:$true] %s298
          %s300 = sshll.u32 [#allocation6], 4
          %s301 = int_to_ptr.vmem [resolvable:$true] %s300
          %306 = dma.hbm_to_vmem [thread:$0]  %s299, 2048, %s301, [#allocation7], 128, 128, 8
        $region24: #{tpu_custom_call.1} parent=11 // pred_fallthru
          _
        // Predicated region
        $region25: #{tpu_custom_call.1} parent=11 // pred_check
          %p307 = pneg %p156
        $region26: #{tpu_custom_call.1} parent=11 // pred_check_branch
          %309 = sbr.rel (%p307) target = $region28
        $region27: #{tpu_custom_call.1} parent=11 // pred_region
          _
        $region28: #{tpu_custom_call.1} parent=11 // pred_fallthru
          _
        // Predicated region
        $region29: #{tpu_custom_call.1} parent=11 // pred_check
          %p310 = pneg %p177
        $region30: #{tpu_custom_call.1} parent=11 // pred_check_branch
          %312 = sbr.rel (%p310) target = $region32
        $region31: #{tpu_custom_call.1} parent=11 // pred_region
          %314 = vsyncadd [#allocation7], 0
          %s315 = sshll.u32 %s6, 4
          %s316 = int_to_ptr.hbm [resolvable:$true] %s315
          %s317 = sshll.u32 [#allocation8], 4
          %s318 = int_to_ptr.vmem [resolvable:$true] %s317
          %323 = dma.hbm_to_vmem [thread:$0]  %s316, 2048, %s318, [#allocation7], 128, 128, 8
        $region32: #{tpu_custom_call.1} parent=11 // pred_fallthru
          _
        // Predicated region
        $region33: #{tpu_custom_call.1} parent=11 // pred_check
          %p324 = pneg %p198
        $region34: #{tpu_custom_call.1} parent=11 // pred_check_branch
          %326 = sbr.rel (%p324) target = $region36
        $region35: #{tpu_custom_call.1} parent=11 // pred_region
          _
        $region36: #{tpu_custom_call.1} parent=11 // pred_fallthru
          _
        // Predicated region
        $region37: #{tpu_custom_call.1} parent=11 // pred_check
          %p327 = pneg %p219
        $region38: #{tpu_custom_call.1} parent=11 // pred_check_branch
          %329 = sbr.rel (%p327) target = $region40
        $region39: #{tpu_custom_call.1} parent=11 // pred_region
          %331 = vsyncadd [#allocation10], 0
          %s332 = sshll.u32 %s8, 4
          %s333 = int_to_ptr.hbm [resolvable:$true] %s332
          %s334 = sshll.u32 [#allocation9], 4
          %s335 = int_to_ptr.vmem [resolvable:$true] %s334
          %340 = dma.hbm_to_vmem [thread:$0]  %s333, 2048, %s335, [#allocation10], 128, 128, 8
        $region40: #{tpu_custom_call.1} parent=11 // pred_fallthru
          _
        // Predicated region
        $region41: #{tpu_custom_call.1} parent=11 // pred_check
          %p341 = pneg %p240
        $region42: #{tpu_custom_call.1} parent=11 // pred_check_branch
          %343 = sbr.rel (%p341) target = $region44
        $region43: #{tpu_custom_call.1} parent=11 // pred_region
          _
        $region44: #{tpu_custom_call.1} parent=11 // pred_fallthru
          _
      $region12: #{tpu_custom_call.1} parent=5 // pred_fallthru
        _
      %p344 = scmp.lt.s32.totalorder %s20, 3
      // Predicated region
      $region45: #{tpu_custom_call.1} parent=5 // pred_check
        %p345 = pneg %p344
      $region46: #{tpu_custom_call.1} parent=5 // pred_check_branch
        %347 = sbr.rel (%p345) target = $region48
      $region47: #{tpu_custom_call.1} parent=5 // pred_region
        // Predicated region
        $region49: #{tpu_custom_call.1} parent=47 // pred_check
          %p348 = pneg %p61
        $region50: #{tpu_custom_call.1} parent=47 // pred_check_branch
          %350 = sbr.rel (%p348) target = $region52
        $region51: #{tpu_custom_call.1} parent=47 // pred_region
          %s351 = smul.u32 2, %s20
          %p352 = scmp.lt.s32.totalorder %s351, 5
          %s353 = scalar_select %p352, %s351, 5
          %s354 = smul.addr %s353, 4
          %s355 = scalar_lea.vmem %s1, %s354
          %s356 = smul.u32 2, %s20
        $region52: #{tpu_custom_call.1} parent=47 // pred_fallthru
          _
        // Predicated region
        $region53: #{tpu_custom_call.1} parent=47 // pred_check
          %p357 = pneg %p87
        $region54: #{tpu_custom_call.1} parent=47 // pred_check_branch
          %359 = sbr.rel (%p357) target = $region56
        $region55: #{tpu_custom_call.1} parent=47 // pred_region
          %s360 = smul.u32 2, %s20
          %p361 = scmp.lt.s32.totalorder %s360, 5
          %s362 = scalar_select %p361, %s360, 5
          %s363 = smul.addr %s362, 4
          %s364 = scalar_lea.vmem %s2, %s363
          %s365 = smul.u32 2, %s20
        $region56: #{tpu_custom_call.1} parent=47 // pred_fallthru
          _
      $region48: #{tpu_custom_call.1} parent=5 // pred_fallthru
        _
      %p366 = scmp.le.s32.totalorder 1, %s20
      %p367 = scmp.lt.s32.totalorder %s20, 4
      %p368 = pnand %p366, %p367
      %p369 = pneg %p368
      // Predicated region
      $region57: #{tpu_custom_call.1} parent=5 // pred_check
        _
      $region58: #{tpu_custom_call.1} parent=5 // pred_check_branch
        %371 = sbr.rel (%p368) target = $region60
      $region59: #{tpu_custom_call.1} parent=5 // pred_region
        %s372 = ssub.s32 %s20, 1
        // Predicated region
        $region61: #{tpu_custom_call.1} parent=59 // pred_check
          %p373 = pneg %p114
        $region62: #{tpu_custom_call.1} parent=59 // pred_check_branch
          %375 = sbr.rel (%p373) target = $region64
        $region63: #{tpu_custom_call.1} parent=59 // pred_region
          %377 = dma.done [#allocation4], 2048
        $region64: #{tpu_custom_call.1} parent=59 // pred_fallthru
          _
        // Predicated region
        $region65: #{tpu_custom_call.1} parent=59 // pred_check
          %p378 = pneg %p135
        $region66: #{tpu_custom_call.1} parent=59 // pred_check_branch
          %380 = sbr.rel (%p378) target = $region68
        $region67: #{tpu_custom_call.1} parent=59 // pred_region
          %382 = dma.done [#allocation7], 2048
        $region68: #{tpu_custom_call.1} parent=59 // pred_fallthru
          _
        // Predicated region
        $region69: #{tpu_custom_call.1} parent=59 // pred_check
          %p383 = pneg %p177
        $region70: #{tpu_custom_call.1} parent=59 // pred_check_branch
          %385 = sbr.rel (%p383) target = $region72
        $region71: #{tpu_custom_call.1} parent=59 // pred_region
          %387 = dma.done [#allocation7], 2048
        $region72: #{tpu_custom_call.1} parent=59 // pred_fallthru
          _
        // Predicated region
        $region73: #{tpu_custom_call.1} parent=59 // pred_check
          %p388 = pneg %p219
        $region74: #{tpu_custom_call.1} parent=59 // pred_check_branch
          %390 = sbr.rel (%p388) target = $region76
        $region75: #{tpu_custom_call.1} parent=59 // pred_region
          %392 = dma.done [#allocation10], 2048
        $region76: #{tpu_custom_call.1} parent=59 // pred_fallthru
          _
        %p393 = pneg %p41
        %p394 = pneg %p38
        %s395 = smul.u32 2, %s25
        %p396 = scmp.lt.s32.totalorder %s395, 5
        %s397 = scalar_select %p396, %s395, 5
        %s398 = smul.addr %s397, 4
        %s399 = scalar_lea.vmem %s1, %s398
        %p400 = pneg %p67
        %p401 = pneg %p64
        %s402 = smul.u32 2, %s25
        %p403 = scmp.lt.s32.totalorder %s402, 5
        %s404 = scalar_select %p403, %s402, 5
        %s405 = smul.addr %s404, 4
        %s406 = scalar_lea.vmem %s2, %s405
        %p407 = pneg %p93
        %p408 = pneg %p90
        %p409 = pneg %p114
        %p410 = pneg %p111
        %p411 = pneg %p135
        %p412 = pneg %p132
        %p413 = pneg %p156
        %p414 = pneg %p153
        %p415 = pneg %p177
        %p416 = pneg %p174
        %p417 = pneg %p198
        %p418 = pneg %p195
        %p419 = pneg %p219
        %p420 = pneg %p216
        %p421 = pneg %p240
        %p422 = pneg %p237
        %p423 = pneg %p261
        %p424 = pneg %p258
        %s425 = smul.u32 2, %s25
        %p426 = scmp.lt.s32.totalorder %s425, 5
        %s427 = scalar_select %p426, %s425, 5
        %s428 = smul.addr %s427, 4
        %s429 = scalar_lea.vmem %s1, %s428
        %s430 = smul.u32 2, %s25
        %s431 = smul.u32 2, %s25
        %p432 = scmp.lt.s32.totalorder %s431, 5
        %s433 = scalar_select %p432, %s431, 5
        %s434 = smul.addr %s433, 4
        %s435 = scalar_lea.vmem %s2, %s434
        %s436 = smul.u32 2, %s25
        %p437 = scmp.eq.s32.totalorder %s25, 0
        // Predicated region
        $region77: #{tpu_custom_call.1} parent=59 // pred_check
          %p438 = pneg %p437
        $region78: #{tpu_custom_call.1} parent=59 // pred_check_branch
          %440 = sbr.rel (%p438) target = $region80
        $region79: #{tpu_custom_call.1} parent=59 // pred_region
          %441 = vst [vmem:[#allocation2] sm:$0xff] 0.0
          %442 = vst [vmem:[#allocation2 + $0x8] sm:$0xff] 0.0
        $region80: #{tpu_custom_call.1} parent=59 // pred_fallthru
          _
        %v443 = vld [vmem:[%s0] sm:$0xff]
        %v444 = vld [vmem:[%s0 + $0x8] sm:$0xff]
        %v445 = vld [vmem:[%s435] sm:$0xf]
        %v446 = vld [vmem:[%s435 + $0x4] sm:$0xf]
        %v447 = vunpack.c.l.bf16 %v445
        %v448 = vunpack.c.l.bf16 %v446
        %v449 = vld [vmem:[%s429] sm:$0xf]
        %v450 = vld [vmem:[%s429 + $0x4] sm:$0xf]
        %v451 = vunpack.c.l.bf16 %v449
        %v452 = vunpack.c.l.bf16 %v450
        %vm453 = vcmask 130048
        %v455 = vsel %vm453, %v447, 0
        %v458 = vsel %vm453, %v448, 0
        %460 = vmatpush.msra.mxu0 0.0
        %461 = vmatpush.msra.mxu0 0.0
        %462 = vmatpush.msra.mxu0 0.0
        %463 = vmatpush.msra.mxu0 0.0
        %464 = vmatpush.msra.mxu0 0.0
        %465 = vmatpush.msra.mxu0 0.0
        %466 = vmatpush.msra.mxu0 0.0
        %467 = vmatpush.msra.mxu0 0.0
        %468 = vmatpush.msra.mxu0 0.0
        %469 = vmatpush.msra.mxu0 0.0
        %470 = vmatpush.msra.mxu0 0.0
        %471 = vmatpush.msra.mxu0 0.0
        %472 = vmatpush.msra.mxu0 0.0
        %473 = vmatpush.msra.mxu0 0.0
        %474 = vmatpush.msra.mxu0 %v444
        %475 = vmatpush.msra.mxu0 %v443
        %476 = vmatmul.f32.gmra.mxu0 %v455
        %v477 = vpop.f32.mrf.mxu0
        %v478 = vadd.f32 0.0, %v477
        %479 = vmatmul.f32.gmra.mxu0 %v458
        %v480 = vpop.f32.mrf.mxu0
        %v481 = vadd.f32 0.0, %v480
        %482 = vdwg.mxu0
        %v484 = vsel %vm453, %v451, 0
        %v487 = vsel %vm453, %v452, 0
        %489 = vmatpush.msra.mxu0 0.0
        %490 = vmatpush.msra.mxu0 0.0
        %491 = vmatpush.msra.mxu0 0.0
        %492 = vmatpush.msra.mxu0 0.0
        %493 = vmatpush.msra.mxu0 0.0
        %494 = vmatpush.msra.mxu0 0.0
        %495 = vmatpush.msra.mxu0 0.0
        %496 = vmatpush.msra.mxu0 0.0
        %497 = vmatpush.msra.mxu0 0.0
        %498 = vmatpush.msra.mxu0 0.0
        %499 = vmatpush.msra.mxu0 0.0
        %500 = vmatpush.msra.mxu0 0.0
        %501 = vmatpush.msra.mxu0 0.0
        %502 = vmatpush.msra.mxu0 0.0
        %503 = vmatpush.msra.mxu0 %v444
        %504 = vmatpush.msra.mxu0 %v443
        %505 = vmatmul.f32.gmra.mxu0 %v484
        %v506 = vpop.f32.mrf.mxu0
        %v507 = vadd.f32 0.0, %v506
        %508 = vmatmul.f32.gmra.mxu0 %v487
        %v509 = vpop.f32.mrf.mxu0
        %v510 = vadd.f32 0.0, %v509
        %511 = vdwg.mxu0
        %v512 = vsub.f32 %v507, %v478
        %v513 = vsub.f32 %v510, %v481
        %v514 = vld [vmem:[#allocation3] sm:$0xff]
        %v515 = vld [vmem:[#allocation3 + $0x8] sm:$0xff]
        %v516 = vld [vmem:[#allocation3 + $0x10] sm:$0xff]
        %v517 = vld [vmem:[#allocation3 + $0x18] sm:$0xff]
        %v518 = vld [vmem:[#allocation3 + $0x20] sm:$0xff]
        %v519 = vld [vmem:[#allocation3 + $0x28] sm:$0xff]
        %v520 = vld [vmem:[#allocation3 + $0x30] sm:$0xff]
        %v521 = vld [vmem:[#allocation3 + $0x38] sm:$0xff]
        %v522 = vld [vmem:[#allocation3 + $0x40] sm:$0xff]
        %v523 = vld [vmem:[#allocation3 + $0x48] sm:$0xff]
        %v524 = vld [vmem:[#allocation3 + $0x50] sm:$0xff]
        %v525 = vld [vmem:[#allocation3 + $0x58] sm:$0xff]
        %v526 = vld [vmem:[#allocation3 + $0x60] sm:$0xff]
        %v527 = vld [vmem:[#allocation3 + $0x68] sm:$0xff]
        %v528 = vld [vmem:[#allocation3 + $0x70] sm:$0xff]
        %v529 = vld [vmem:[#allocation3 + $0x78] sm:$0xff]
        %v530 = vld [vmem:[#allocation6] sm:$0xff]
        %v531 = vld [vmem:[#allocation6 + $0x8] sm:$0xff]
        %v532 = vld [vmem:[#allocation6 + $0x10] sm:$0xff]
        %v533 = vld [vmem:[#allocation6 + $0x18] sm:$0xff]
        %v534 = vld [vmem:[#allocation6 + $0x20] sm:$0xff]
        %v535 = vld [vmem:[#allocation6 + $0x28] sm:$0xff]
        %v536 = vld [vmem:[#allocation6 + $0x30] sm:$0xff]
        %v537 = vld [vmem:[#allocation6 + $0x38] sm:$0xff]
        %v538 = vld [vmem:[#allocation6 + $0x40] sm:$0xff]
        %v539 = vld [vmem:[#allocation6 + $0x48] sm:$0xff]
        %v540 = vld [vmem:[#allocation6 + $0x50] sm:$0xff]
        %v541 = vld [vmem:[#allocation6 + $0x58] sm:$0xff]
        %v542 = vld [vmem:[#allocation6 + $0x60] sm:$0xff]
        %v543 = vld [vmem:[#allocation6 + $0x68] sm:$0xff]
        %v544 = vld [vmem:[#allocation6 + $0x70] sm:$0xff]
        %v545 = vld [vmem:[#allocation6 + $0x78] sm:$0xff]
        %546 = vmatpush.msra.mxu0 %v545
        %547 = vmatpush.msra.mxu0 %v544
        %548 = vmatpush.msra.mxu0 %v543
        %549 = vmatpush.msra.mxu0 %v542
        %550 = vmatpush.msra.mxu0 %v541
        %551 = vmatpush.msra.mxu0 %v540
        %552 = vmatpush.msra.mxu0 %v539
        %553 = vmatpush.msra.mxu0 %v538
        %554 = vmatpush.msra.mxu0 %v537
        %555 = vmatpush.msra.mxu0 %v536
        %556 = vmatpush.msra.mxu0 %v535
        %557 = vmatpush.msra.mxu0 %v534
        %558 = vmatpush.msra.mxu0 %v533
        %559 = vmatpush.msra.mxu0 %v532
        %560 = vmatpush.msra.mxu0 %v531
        %561 = vmatpush.msra.mxu0 %v530
        %562 = vmatmul.f32.gmra.mxu0 %v512
        %v563 = vpop.f32.mrf.mxu0
        %v564 = vadd.f32 0.0, %v563
        %565 = vmatmul.f32.gmra.mxu0 %v513
        %v566 = vpop.f32.mrf.mxu0
        %v567 = vadd.f32 0.0, %v566
        %568 = vdwg.mxu0
        %569 = vmatpush.msra.mxu0 %v529
        %570 = vmatpush.msra.mxu0 %v528
        %571 = vmatpush.msra.mxu0 %v527
        %572 = vmatpush.msra.mxu0 %v526
        %573 = vmatpush.msra.mxu0 %v525
        %574 = vmatpush.msra.mxu0 %v524
        %575 = vmatpush.msra.mxu0 %v523
        %576 = vmatpush.msra.mxu0 %v522
        %577 = vmatpush.msra.mxu0 %v521
        %578 = vmatpush.msra.mxu0 %v520
        %579 = vmatpush.msra.mxu0 %v519
        %580 = vmatpush.msra.mxu0 %v518
        %581 = vmatpush.msra.mxu0 %v517
        %582 = vmatpush.msra.mxu0 %v516
        %583 = vmatpush.msra.mxu0 %v515
        %584 = vmatpush.msra.mxu0 %v514
        %585 = vmatmul.f32.gmra.mxu0 %v478
        %v586 = vpop.f32.mrf.mxu0
        %v587 = vadd.f32 %v564, %v586
        %588 = vmatmul.f32.gmra.mxu0 %v481
        %v589 = vpop.f32.mrf.mxu0
        %v590 = vadd.f32 %v567, %v589
        %591 = vdwg.mxu0
        %v592 = vld [vmem:[%s5] sm:$0x1]
        %v594 = vperm.slane %v592, 0
        %v596 = vadd.f32 %v587, %v594
        %v597 = vadd.f32 %v590, %v594
        %v598 = vmax.f32 %v596, 0.0
        %v599 = vmax.f32 %v597, 0.0
        %v600 = vld [vmem:[#allocation8] sm:$0xff]
        %v601 = vld [vmem:[#allocation8 + $0x8] sm:$0xff]
        %v602 = vld [vmem:[#allocation8 + $0x10] sm:$0xff]
        %v603 = vld [vmem:[#allocation8 + $0x18] sm:$0xff]
        %v604 = vld [vmem:[#allocation8 + $0x20] sm:$0xff]
        %v605 = vld [vmem:[#allocation8 + $0x28] sm:$0xff]
        %v606 = vld [vmem:[#allocation8 + $0x30] sm:$0xff]
        %v607 = vld [vmem:[#allocation8 + $0x38] sm:$0xff]
        %v608 = vld [vmem:[#allocation8 + $0x40] sm:$0xff]
        %v609 = vld [vmem:[#allocation8 + $0x48] sm:$0xff]
        %v610 = vld [vmem:[#allocation8 + $0x50] sm:$0xff]
        %v611 = vld [vmem:[#allocation8 + $0x58] sm:$0xff]
        %v612 = vld [vmem:[#allocation8 + $0x60] sm:$0xff]
        %v613 = vld [vmem:[#allocation8 + $0x68] sm:$0xff]
        %v614 = vld [vmem:[#allocation8 + $0x70] sm:$0xff]
        %v615 = vld [vmem:[#allocation8 + $0x78] sm:$0xff]
        %v616 = vld [vmem:[%s7] sm:$0x1]
        %v618 = vperm.slane %v616, 0
        %620 = vmatpush.msra.mxu0 %v615
        %621 = vmatpush.msra.mxu0 %v614
        %622 = vmatpush.msra.mxu0 %v613
        %623 = vmatpush.msra.mxu0 %v612
        %624 = vmatpush.msra.mxu0 %v611
        %625 = vmatpush.msra.mxu0 %v610
        %626 = vmatpush.msra.mxu0 %v609
        %627 = vmatpush.msra.mxu0 %v608
        %628 = vmatpush.msra.mxu0 %v607
        %629 = vmatpush.msra.mxu0 %v606
        %630 = vmatpush.msra.mxu0 %v605
        %631 = vmatpush.msra.mxu0 %v604
        %632 = vmatpush.msra.mxu0 %v603
        %633 = vmatpush.msra.mxu0 %v602
        %634 = vmatpush.msra.mxu0 %v601
        %635 = vmatpush.msra.mxu0 %v600
        %636 = vmatmul.f32.gmra.mxu0 %v598
        %v637 = vpop.f32.mrf.mxu0
        %v638 = vadd.f32 %v618, %v637
        %639 = vmatmul.f32.gmra.mxu0 %v599
        %v640 = vpop.f32.mrf.mxu0
        %v641 = vadd.f32 %v618, %v640
        %642 = vdwg.mxu0
        %v643 = vmax.f32 %v638, 0.0
        %v644 = vmax.f32 %v641, 0.0
        %v645 = vld [vmem:[#allocation2] sm:$0xff]
        %v646 = vld [vmem:[#allocation2 + $0x8] sm:$0xff]
        %647 = vxpose.xlu0.b32.start [1/16] %v447, 128
        %648 = vxpose.xlu0.b32.cont [2/16] %v448, 128
        %649 = vxpose.xlu0.b32.cont [3/16] 0.0, 128
        %650 = vxpose.xlu0.b32.cont [4/16] 0.0, 128
        %651 = vxpose.xlu0.b32.cont [5/16] 0.0, 128
        %652 = vxpose.xlu0.b32.cont [6/16] 0.0, 128
        %653 = vxpose.xlu0.b32.cont [7/16] 0.0, 128
        %654 = vxpose.xlu0.b32.cont [8/16] 0.0, 128
        %655 = vxpose.xlu0.b32.cont [9/16] 0.0, 128
        %656 = vxpose.xlu0.b32.cont [10/16] 0.0, 128
        %657 = vxpose.xlu0.b32.cont [11/16] 0.0, 128
        %658 = vxpose.xlu0.b32.cont [12/16] 0.0, 128
        %659 = vxpose.xlu0.b32.cont [13/16] 0.0, 128
        %660 = vxpose.xlu0.b32.cont [14/16] 0.0, 128
        %661 = vxpose.xlu0.b32.cont [15/16] 0.0, 128
        %662 = vxpose.xlu0.b32.end [16/16] 0.0, 128
        %v663 = vpop.trf.xlu0
        %v664 = vpop.trf.xlu0
        %v665 = vpop.trf.xlu0
        %v666 = vpop.trf.xlu0
        %v667 = vpop.trf.xlu0
        %v668 = vpop.trf.xlu0
        %v669 = vpop.trf.xlu0
        %v670 = vpop.trf.xlu0
        %v671 = vpop.trf.xlu0
        %v672 = vpop.trf.xlu0
        %v673 = vpop.trf.xlu0
        %v674 = vpop.trf.xlu0
        %v675 = vpop.trf.xlu0
        %v676 = vpop.trf.xlu0
        %v677 = vpop.trf.xlu0
        %v678 = vpop.trf.xlu0
        %v680 = vsel %vm453, %v663, 0
        %v683 = vsel %vm453, %v664, 0
        %685 = vmatpush.msra.mxu0 0.0
        %686 = vmatpush.msra.mxu0 0.0
        %687 = vmatpush.msra.mxu0 0.0
        %688 = vmatpush.msra.mxu0 0.0
        %689 = vmatpush.msra.mxu0 0.0
        %690 = vmatpush.msra.mxu0 0.0
        %691 = vmatpush.msra.mxu0 0.0
        %692 = vmatpush.msra.mxu0 0.0
        %693 = vmatpush.msra.mxu0 0.0
        %694 = vmatpush.msra.mxu0 0.0
        %695 = vmatpush.msra.mxu0 0.0
        %696 = vmatpush.msra.mxu0 0.0
        %697 = vmatpush.msra.mxu0 0.0
        %698 = vmatpush.msra.mxu0 0.0
        %699 = vmatpush.msra.mxu0 %v644
        %700 = vmatpush.msra.mxu0 %v643
        %701 = vmatmul.f32.gmra.mxu0 %v680
        %v702 = vpop.f32.mrf.mxu0
        %v703 = vadd.f32 0.0, %v702
        %704 = vmatmul.f32.gmra.mxu0 %v683
        %v705 = vpop.f32.mrf.mxu0
        %v706 = vadd.f32 0.0, %v705
        %707 = vdwg.mxu0
        %v708 = vadd.f32 %v645, %v703
        %v709 = vadd.f32 %v646, %v706
        %710 = vst [vmem:[#allocation2] sm:$0xff] %v708
        %711 = vst [vmem:[#allocation2 + $0x8] sm:$0xff] %v709
        %p712 = scmp.eq.s32.totalorder %s25, 2
        // Predicated region
        $region81: #{tpu_custom_call.1} parent=59 // pred_check
          %p713 = pneg %p712
        $region82: #{tpu_custom_call.1} parent=59 // pred_check_branch
          %715 = sbr.rel (%p713) target = $region84
        $region83: #{tpu_custom_call.1} parent=59 // pred_region
          %v716 = vld [vmem:[#allocation9] sm:$0xff]
          %v717 = vld [vmem:[#allocation9 + $0x8] sm:$0xff]
          %v718 = vld [vmem:[#allocation9 + $0x10] sm:$0xff]
          %v719 = vld [vmem:[#allocation9 + $0x18] sm:$0xff]
          %v720 = vld [vmem:[#allocation9 + $0x20] sm:$0xff]
          %v721 = vld [vmem:[#allocation9 + $0x28] sm:$0xff]
          %v722 = vld [vmem:[#allocation9 + $0x30] sm:$0xff]
          %v723 = vld [vmem:[#allocation9 + $0x38] sm:$0xff]
          %v724 = vld [vmem:[#allocation9 + $0x40] sm:$0xff]
          %v725 = vld [vmem:[#allocation9 + $0x48] sm:$0xff]
          %v726 = vld [vmem:[#allocation9 + $0x50] sm:$0xff]
          %v727 = vld [vmem:[#allocation9 + $0x58] sm:$0xff]
          %v728 = vld [vmem:[#allocation9 + $0x60] sm:$0xff]
          %v729 = vld [vmem:[#allocation9 + $0x68] sm:$0xff]
          %v730 = vld [vmem:[#allocation9 + $0x70] sm:$0xff]
          %v731 = vld [vmem:[#allocation9 + $0x78] sm:$0xff]
          %v732 = vld [vmem:[%s9] sm:$0x1]
          %v734 = vperm.slane %v732, 0
          %736 = vmatpush.msra.mxu0 %v731
          %737 = vmatpush.msra.mxu0 %v730
          %738 = vmatpush.msra.mxu0 %v729
          %739 = vmatpush.msra.mxu0 %v728
          %740 = vmatpush.msra.mxu0 %v727
          %741 = vmatpush.msra.mxu0 %v726
          %742 = vmatpush.msra.mxu0 %v725
          %743 = vmatpush.msra.mxu0 %v724
          %744 = vmatpush.msra.mxu0 %v723
          %745 = vmatpush.msra.mxu0 %v722
          %746 = vmatpush.msra.mxu0 %v721
          %747 = vmatpush.msra.mxu0 %v720
          %748 = vmatpush.msra.mxu0 %v719
          %749 = vmatpush.msra.mxu0 %v718
          %750 = vmatpush.msra.mxu0 %v717
          %751 = vmatpush.msra.mxu0 %v716
          %752 = vmatmul.f32.gmra.mxu0 %v443
          %v753 = vpop.f32.mrf.mxu0
          %v754 = vadd.f32 %v734, %v753
          %755 = vmatmul.f32.gmra.mxu0 %v444
          %v756 = vpop.f32.mrf.mxu0
          %v757 = vadd.f32 %v734, %v756
          %758 = vdwg.mxu0
          %v759 = vld [vmem:[#allocation2] sm:$0xff]
          %v760 = vld [vmem:[#allocation2 + $0x8] sm:$0xff]
          %v761 = vadd.f32 %v754, %v759
          %v762 = vadd.f32 %v757, %v760
          %v763 = vmax.f32 %v761, 0.0
          %v764 = vmax.f32 %v762, 0.0
          %765 = vst [vmem:[#allocation11] sm:$0xff] %v763
          %766 = vst [vmem:[#allocation11 + $0x8] sm:$0xff] %v764
        $region84: #{tpu_custom_call.1} parent=59 // pred_fallthru
          _
        // Predicated region
        $region85: #{tpu_custom_call.1} parent=59 // pred_check
          %p767 = pneg %p258
        $region86: #{tpu_custom_call.1} parent=59 // pred_check_branch
          %769 = sbr.rel (%p767) target = $region88
        $region87: #{tpu_custom_call.1} parent=59 // pred_region
          %771 = vsyncadd [#allocation5], 0
          %s772 = sshll.u32 [#allocation11], 4
          %s773 = int_to_ptr.vmem [resolvable:$true] %s772
          %s774 = sshll.u32 %s10, 4
          %s775 = int_to_ptr.hbm [resolvable:$true] %s774
          %780 = dma.vmem_to_hbm [thread:$0]  %s773, 256, %s775, [#allocation5], 128, 128, 8
        $region88: #{tpu_custom_call.1} parent=59 // pred_fallthru
          _
        // Predicated region
        $region89: #{tpu_custom_call.1} parent=59 // pred_check
          %p781 = pneg %p258
        $region90: #{tpu_custom_call.1} parent=59 // pred_check_branch
          %783 = sbr.rel (%p781) target = $region92
        $region91: #{tpu_custom_call.1} parent=59 // pred_region
          %785 = dma.done [#allocation5], 256
        $region92: #{tpu_custom_call.1} parent=59 // pred_fallthru
          _
      $region60: #{tpu_custom_call.1} parent=5 // pred_fallthru
        _
      %p786 = scmp.le.s32.totalorder 2, %s20
      // Predicated region
      $region93: #{tpu_custom_call.1} parent=5 // pred_check
        %p787 = pneg %p786
      $region94: #{tpu_custom_call.1} parent=5 // pred_check_branch
        %789 = sbr.rel (%p787) target = $region96
      $region95: #{tpu_custom_call.1} parent=5 // pred_region
        %s790 = ssub.s32 %s20, 2
      $region96: #{tpu_custom_call.1} parent=5 // pred_fallthru
        _
    $region6: #{tpu_custom_call.1} parent=1 // loop_footer
      %s24 = sadd.s32 1, %s20
    $region7: #{tpu_custom_call.1} parent=1 // loop_footer_branch
      %19 = sbr.rel target = $region3
    $region8: #{tpu_custom_call.1} parent=1 // loop_exit
      _
    %791 = vsyncpa [#allocation4], 1
    %s792 = scalar_lea.sflag [#allocation4], 1
    %793 = vsyncpa %s792, 1
    %794 = vsyncpa [#allocation7], 1
    %795 = vsyncpa [#allocation10], 1
    %796 = vsyncpa [#allocation5], 1
    %s797 = scalar_lea.sflag [#allocation5], 1
    %798 = vsyncpa %s797, 1

</llo_original>
